<compile_context>
chip_gen: v5e
topology: v5e:2x2
jax: 0.10.0
libtpu: 0.0.40
codegen_flags: <defaults>
</compile_context>

<pallas_src>
import jax
import jax.numpy as jnp
from jax.experimental import pallas as pl
from jax.experimental.pallas import tpu as pltpu


# ----------------------------------------------------------------------------
# Zero-copy path: aliased pass-through (default)
# ----------------------------------------------------------------------------

def _passthrough_kernel(x_ref, o_ref):
    # The output buffer is aliased to the input (input_output_aliases={0: 0});
    # the flattened bytes are already in place, so there is nothing to move.
    # Zero HBM<->VMEM traffic on every TPU generation.
    del x_ref, o_ref


def _flatten_passthrough(x2):
    return pl.pallas_call(
        _passthrough_kernel,
        out_shape=jax.ShapeDtypeStruct(x2.shape, x2.dtype),
        in_specs=[pl.BlockSpec(memory_space=pl.ANY)],
        out_specs=pl.BlockSpec(memory_space=pl.ANY),
        input_output_aliases={0: 0},
    )(x2)


# ----------------------------------------------------------------------------
# Materialized-copy path (only when a fresh buffer is explicitly requested)
# ----------------------------------------------------------------------------

def _copy_kernel(x_ref, o_ref):
    # Straight tile copy; BlockSpecs present the data as a lane/sublane-dense
    # 2-D slab, so the only cost is the HBM<->VMEM data movement.
    o_ref[...] = x_ref[...]


def _target_block_bytes():
    """Generation-aware block size for the streaming copy."""
    try:
        kind = jax.devices()[0].device_kind.lower()
    except Exception:  # pragma: no cover - defensive
        kind = ""
    # v7x: 3.2 TB/s HBM -> 8 MiB blocks keep per-step overhead ~5-7%.
    # v5e/v6e: 4 MiB blocks already sit at ~85%+ of HBM roofline.
    return (8 << 20) if "v7" in kind else (4 << 20)


def _choose_slab(total):
    """Pick a lane-dense 2-D slab (rows, cols) with rows * cols == total.

    cols is any multiple of 128 (lane width) dividing total; prefer a cols that
    leaves rows >= 8 so the slab is also sublane-dense.  Blocks always span the
    full cols extent, so every block is one fully-contiguous HBM region.
    """
    if total % 128 == 0:
        for c in (4096, 2048, 1024, 768, 640, 512, 384, 256, 128):
            if total % c == 0 and total // c >= 8:
                return total // c, c
        return total // 128, 128
    # Ragged corner case (total not a multiple of 128): single sublane row.
    # TODO(synk): densify the 128-aligned prefix for ragged totals; the default
    # zero-copy path already handles ragged sizes with no traffic at all.
    return 1, total


def _flatten_copy(x, out_shape, total):
    rows, cols = _choose_slab(total)
    # Metadata-only reshape: x is row-major, so this preserves torch .view order.
    x2 = jnp.reshape(x, (rows, cols))

    itemsize = jnp.dtype(x.dtype).itemsize
    sublane = {4: 8, 2: 16, 1: 32}.get(itemsize, 8)  # dtype-native sublane pack

    if rows == 1:
        # Ragged corner case: tile along lanes only, tail masked by Pallas.
        tile_c = cols if cols <= 64 * 1024 else 64 * 1024  # multiple of 128
        grid = (pl.cdiv(cols, tile_c),)
        block = (1, tile_c)
        index_map = lambda j: (0, j)
    else:
        target = _target_block_bytes()
        tile_r = max(1, target // (cols * itemsize))
        if tile_r >= rows:
            tile_r = rows  # full extent -> (8,128) rule satisfied
        else:
            tile_r = max(sublane, (tile_r // sublane) * sublane)
        grid = (pl.cdiv(rows, tile_r),)
        block = (tile_r, cols)
        index_map = lambda i: (i, 0)

    block_bytes = block[0] * block[1] * itemsize
    # 2 operands x 2 pipeline buffers x block, plus margin for compiler scratch.
    vmem_limit = max(8 << 20, 4 * block_bytes + (4 << 20))

    slab = pl.pallas_call(
        _copy_kernel,
        out_shape=jax.ShapeDtypeStruct((rows, cols), x.dtype),
        grid_spec=pl.GridSpec(
            grid=grid,
            in_specs=[pl.BlockSpec(block, index_map)],
            out_specs=pl.BlockSpec(block, index_map),
        ),
        compiler_params=pltpu.CompilerParams(
            dimension_semantics=("parallel",),  # shard the copy across v7x's 2 TCs
            vmem_limit_bytes=int(vmem_limit),
        ),
    )(x2)

    # Final reshape to the requested flattened shape is metadata-only.
    return jnp.reshape(slab, out_shape)


# ----------------------------------------------------------------------------
# Public wrapper (Flatten.forward equivalent)
# ----------------------------------------------------------------------------

def flatten_pallas(x, batch=True, materialize=False):
    """Pallas equivalent of Flatten.forward.

    Default (materialize=False): zero-copy — metadata-only reshape plus an
    aliased pass-through pallas_call (no HBM traffic).
    materialize=True: stream the payload through a tiled HBM->VMEM->HBM copy
    and return a fresh buffer.
    """
    total = int(x.size)
    if batch:
        b = x.shape[0]
        out_shape = (b, total // b if b else 0)
    else:
        out_shape = (total,)

    if total == 0:
        return jnp.reshape(x, out_shape)

    if not materialize:
        x2 = jnp.reshape(x, out_shape)  # metadata-only, matches torch .view order
        try:
            return _flatten_passthrough(x2)
        except Exception:  # pragma: no cover - defensive
            # If this Mosaic build rejects the no-op aliased kernel, fall back
            # to the materialized tiled copy below (still correct, just slower).
            pass

    return _flatten_copy(x, out_shape, total)


if __name__ == "__main__":
    key = jax.random.PRNGKey(0)
    # Small NCHW input consistent with a conv feature map: B=2, C=4, H=W=16.
    x = jax.random.normal(key, (2, 4, 16, 16), dtype=jnp.float32)

    # Default zero-copy path: batch=True  -> (2, 1024)
    y = jax.block_until_ready(flatten_pallas(x, batch=True))
    assert y.shape == (2, 4 * 16 * 16)
    assert y.dtype == x.dtype
    assert bool(jnp.array_equal(y, x.reshape(x.shape[0], -1)))

    # Default zero-copy path: batch=False -> (2048,)
    y_flat = jax.block_until_ready(flatten_pallas(x, batch=False))
    assert y_flat.shape == (2 * 4 * 16 * 16,)
    assert bool(jnp.array_equal(y_flat, x.reshape(-1)))

    # Materialized (fresh-buffer) path, both modes.
    y_mat = jax.block_until_ready(flatten_pallas(x, batch=True, materialize=True))
    assert y_mat.shape == (2, 4 * 16 * 16)
    assert bool(jnp.array_equal(y_mat, x.reshape(x.shape[0], -1)))

    y_mat_flat = jax.block_until_ready(flatten_pallas(x, batch=False, materialize=True))
    assert y_mat_flat.shape == (2 * 4 * 16 * 16,)
    assert bool(jnp.array_equal(y_mat_flat, x.reshape(-1)))

    print("KERNEL_OK")
</pallas_src>

<mosaic_0001>
module attributes {stable_mosaic.version = 11 : i64} {
  func.func @_passthrough_kernel(%arg0: memref<2x1024xf32, #tpu.memory_space<any>>, %arg1: memref<2x1024xf32, #tpu.memory_space<any>>) attributes {dimension_semantics = [], scalar_prefetch = 0 : i64, scratch_operands = 0 : i64, tpu.core_type = #tpu.core_type<tc>} {
    return
  }
}

module attributes {stable_mosaic.version = 11 : i64} {
  func.func @_copy_kernel(%arg0: i32, %arg1: memref<8x256xf32, #tpu.memory_space<vmem>>, %arg2: memref<8x256xf32, #tpu.memory_space<vmem>>) attributes {dimension_semantics = [#tpu.dimension_semantics<parallel>], iteration_bounds = array<i64: 1>, scalar_prefetch = 0 : i64, scratch_operands = 0 : i64, tpu.core_type = #tpu.core_type<tc>, window_params = [{transform_indices = @transform_0, window_bounds = array<i64: 8, 256>}, {transform_indices = @transform_1, window_bounds = array<i64: 8, 256>}]} {
    %c0 = arith.constant 0 : index
    %c0_0 = arith.constant 0 : index
    %0 = vector.load %arg1[%c0, %c0_0] : memref<8x256xf32, #tpu.memory_space<vmem>>, vector<8x256xf32>
    %c0_1 = arith.constant 0 : index
    %c0_2 = arith.constant 0 : index
    %1 = vector.load %arg2[%c0_1, %c0_2] : memref<8x256xf32, #tpu.memory_space<vmem>>, vector<8x256xf32>
    tpu.vector_store %arg2[%c0_1, %c0_2], %0 {strides = array<i32>} : memref<8x256xf32, #tpu.memory_space<vmem>>, vector<8x256xf32>,
    return
  }
  func.func @transform_0(%arg0: i32) -> (i32, i32) {
    %c0_i32 = arith.constant 0 : i32
    %c0_i32_0 = arith.constant 0 : i32
    return %arg0, %c0_i32 : i32, i32
  }
  func.func @transform_1(%arg0: i32) -> (i32, i32) {
    %c0_i32 = arith.constant 0 : i32
    %c0_i32_0 = arith.constant 0 : i32
    return %arg0, %c0_i32 : i32, i32
  }
}

</mosaic_0001>

<llo_original>
// kernel: tpu_custom_call.1
$region0: #{tpu_custom_call.1}
  #allocation0 [shape = 'u32[]', space=smem, size = 0x4, offset = 0x4, fixed_abs, tag = 'smem constant byte address 0x4 - core index']
  #allocation1 [shape = 'u32[72,128]{1,0:T(1,128)}', space=vmem, size = 0x9000, scoped, tag = 'internal scratch']
  %s0 = inlined_call_operand.hbm [shape: f32[2,1024], index: 0, kind: input, shape index: {}, may-alias: {0,1}]
  %s1 = inlined_call_operand.hbm [shape: f32[2,1024], index: 1, kind: output, shape index: {}, may-alias: {0,1}]
  %s2 = sld [smem:[#allocation0]]
  $region2: #{tpu_custom_call.1} parent=0
    _
  %s4 = ssub.s32 1, %s2
  %s5 = scalar_select 0, %s4, %s2

// kernel: tpu_custom_call.1
$region0: #{tpu_custom_call.1}
  #allocation0 [shape = 'u32[]', space=smem, size = 0x4, offset = 0x4, fixed_abs, tag = 'smem constant byte address 0x4 - core index']
  #allocation1 [shape = 'u32[72,128]{1,0:T(1,128)}', space=vmem, size = 0x9000, scoped, tag = 'internal scratch']
  %s0 = inlined_call_operand.hbm [shape: f32[8,256], index: 0, kind: input, shape index: {}]
  %s1 = inlined_call_operand.hbm [shape: f32[8,256], index: 1, kind: output, shape index: {}]
  %s2 = sld [smem:[#allocation0]]
  $region18: #{tpu_custom_call.1} parent=0
    _
  %s4 = ssub.s32 1, %s2
  %s5 = scalar_select 0, %s4, %s2
  $region1: #{tpu_custom_call.1} parent=0
    #allocation2 [shape = 'u8[8192]{0}', space=vmem, size = 0x2000, scoped, tag = 'input window, operand 0, single buffered']
    #allocation3 [shape = 's32[1]{0}', space=sflag, size = 0x4, scoped, tag = 'scoped memory for tpu_custom_call.1']
    #allocation4 [shape = 's32[1]{0}', space=sflag, size = 0x4, scoped, tag = 'scoped memory for tpu_custom_call.1']
    #allocation5 [shape = 'u8[8192]{0}', space=vmem, size = 0x2000, scoped, tag = 'output window, operand 0, single buffered']
    %6 = vsyncpa [#allocation3], 0
    %7 = vsyncpa [#allocation4], 0
    // Predicated region
    $region2: #{tpu_custom_call.1} parent=1 // pred_check
      _
    $region3: #{tpu_custom_call.1} parent=1 // pred_check_branch
      %9 = sbr.rel (0) target = $region5
    $region4: #{tpu_custom_call.1} parent=1 // pred_region
      %11 = vsyncadd [#allocation3], 0
      %s13 = sshll.u32 %s0, 4
      %s14 = int_to_ptr.hbm [resolvable:$true] %s13
      %s15 = sshll.u32 [#allocation2], 4
      %s16 = int_to_ptr.vmem [resolvable:$true] %s15
      %18 = dma.hbm_to_vmem [thread:$0]  %s14, 256, %s16, [#allocation3]
    $region5: #{tpu_custom_call.1} parent=1 // pred_fallthru
      _
    // Predicated region
    $region6: #{tpu_custom_call.1} parent=1 // pred_check
      _
    $region7: #{tpu_custom_call.1} parent=1 // pred_check_branch
      %20 = sbr.rel (0) target = $region9
    $region8: #{tpu_custom_call.1} parent=1 // pred_region
      %22 = dma.done [#allocation3], 256
    $region9: #{tpu_custom_call.1} parent=1 // pred_fallthru
      _
    %v23 = vld [vmem:[#allocation2] sm:$0xff]
    %v24 = vld [vmem:[#allocation2 + $0x8] sm:$0xff]
    %25 = vst [vmem:[#allocation5] sm:$0xff] %v23
    %26 = vst [vmem:[#allocation5 + $0x8] sm:$0xff] %v24
    // Predicated region
    $region10: #{tpu_custom_call.1} parent=1 // pred_check
      _
    $region11: #{tpu_custom_call.1} parent=1 // pred_check_branch
      %28 = sbr.rel (0) target = $region13
    $region12: #{tpu_custom_call.1} parent=1 // pred_region
      %30 = vsyncadd [#allocation4], 0
      %s32 = sshll.u32 [#allocation5], 4
      %s33 = int_to_ptr.vmem [resolvable:$true] %s32
      %s34 = sshll.u32 %s1, 4
      %s35 = int_to_ptr.hbm [resolvable:$true] %s34
      %37 = dma.vmem_to_hbm [thread:$0]  %s33, 256, %s35, [#allocation4]
    $region13: #{tpu_custom_call.1} parent=1 // pred_fallthru
      _
    // Predicated region
    $region14: #{tpu_custom_call.1} parent=1 // pred_check
      _
    $region15: #{tpu_custom_call.1} parent=1 // pred_check_branch
      %39 = sbr.rel (0) target = $region17
    $region16: #{tpu_custom_call.1} parent=1 // pred_region
      %41 = dma.done [#allocation4], 256
    $region17: #{tpu_custom_call.1} parent=1 // pred_fallthru
      _
    %42 = vsyncpa [#allocation3], 1
    %43 = vsyncpa [#allocation4], 1

</llo_original>
